<compile_context>
chip_gen: v5e
topology: v5e:2x2
jax: 0.10.0
libtpu: 0.0.40
codegen_flags: <defaults>
</compile_context>

<pallas_src>
import functools

import jax
import jax.numpy as jnp
from jax import lax
from jax.experimental import pallas as pl
from jax.experimental.pallas import tpu as pltpu


def _fast_sigmoid(x):
    # Single EUP push (tanh) instead of exp + reciprocal.
    return 0.5 * jnp.tanh(0.5 * x) + 0.5


def _lstm_block_kernel(gx_ref, whh_ref, hs_ref, h_scr, c_scr, *, t_blk, hidden):
    """One T-block of the serial LSTM recurrence.

    gx_ref  : (T_BLK, B, 4H) f32   precomputed x_t @ W_ih.T + (b_ih + b_hh),
                                   gate columns permuted to (i, f, o, g)
    whh_ref : (H, 4H)        f32   W_hh.T with the same column permutation
    hs_ref  : (B, T_BLK*H)   f32   lane-dense hidden-state output block
    h_scr   : (B, H)         f32   persistent hidden state (VMEM scratch)
    c_scr   : (B, H)         f32   persistent cell state   (VMEM scratch)
    """
    H = hidden

    @pl.when(pl.program_id(0) == 0)
    def _():
        h_scr[...] = jnp.zeros_like(h_scr)
        c_scr[...] = jnp.zeros_like(c_scr)

    h = h_scr[...]
    c = c_scr[...]

    # Modest static unroll within the block; h/c stay in vregs here.
    for t in range(t_blk):
        gates = gx_ref[t] + jnp.dot(h, whh_ref[...],
                                    preferred_element_type=jnp.float32)
        # Permuted gate order (i, f, o, g): one sigmoid covers lanes [0:3H].
        sig = _fast_sigmoid(gates[:, : 3 * H])
        i_g = sig[:, :H]
        f_g = sig[:, H:2 * H]
        o_g = sig[:, 2 * H:3 * H]
        g_g = jnp.tanh(gates[:, 3 * H:])
        c = f_g * c + i_g * g_g
        h = o_g * jnp.tanh(c)
        # Static-offset store into the lane-dense (B, T_BLK*H) output block;
        # the block writeback DMA to HBM is a single contiguous 128-lane slab.
        hs_ref[:, t * H:(t + 1) * H] = h

    # Carry state to the next grid iteration.
    h_scr[...] = h
    c_scr[...] = c


@functools.partial(jax.jit, static_argnames=("t_blk",))
def lstm_classifier_forward(x, w_ih, w_hh, b_ih, b_hh, w_fc, b_fc, *, t_blk=4):
    """x: (B, T, D) float32 -> (B, T, num_classes) float32."""
    B, T, D = x.shape
    H = w_hh.shape[1]
    assert T % t_blk == 0, "toy sizes chosen so T_BLK divides T"
    n_blk = T // t_blk

    xf = x.astype(jnp.float32)

    # Permute PyTorch gate order (i, f, g, o) -> (i, f, o, g) once, in the
    # wrapper, so the kernel needs one sigmoid over [0:3H] and one tanh over
    # [3H:4H].
    perm = jnp.concatenate([jnp.arange(0, 2 * H),
                            jnp.arange(3 * H, 4 * H),
                            jnp.arange(2 * H, 3 * H)])
    w_ih_p = w_ih[perm].astype(jnp.float32)          # (4H, D), permuted rows
    whh_t = w_hh[perm].astype(jnp.float32).T         # (H, 4H), permuted cols
    bias_p = (b_ih + b_hh)[perm].astype(jnp.float32)  # (4H,)

    # Input projection + fused bias for ALL timesteps as one matmul, produced
    # directly in (T, B, 4H) order.
    gates_x = jnp.einsum('btd,gd->tbg', xf, w_ih_p) + bias_p   # (T, B, 4H)

    kernel = functools.partial(_lstm_block_kernel, t_blk=t_blk, hidden=H)

    # Advisory cost estimate so XLA schedules the surrounding einsums sensibly.
    flops = T * (2 * B * H * 4 * H + 12 * B * H)
    transcendentals = T * B * 5 * H
    bytes_accessed = (T * B * 4 * H + H * 4 * H + B * T * H) * 4

    hs_flat = pl.pallas_call(
        kernel,
        out_shape=jax.ShapeDtypeStruct((B, T * H), jnp.float32),
        grid_spec=pltpu.PrefetchScalarGridSpec(
            num_scalar_prefetch=0,
            grid=(n_blk,),
            in_specs=[
                # gates_x blocked along T; pipelined against compute.
                pl.BlockSpec((t_blk, B, 4 * H), lambda tb: (tb, 0, 0)),
                # W_hh: constant block index -> fetched once, stays resident.
                pl.BlockSpec((H, 4 * H), lambda tb: (0, 0)),
            ],
            # Lane-dense output block: T_BLK*H (=128 at toy sizes) lanes.
            out_specs=pl.BlockSpec((B, t_blk * H), lambda tb: (0, tb)),
            scratch_shapes=[pltpu.VMEM((B, H), jnp.float32),   # h carry
                            pltpu.VMEM((B, H), jnp.float32)],  # c carry
        ),
        compiler_params=pltpu.CompilerParams(
            # T-block axis carries h/c state -> strictly serial.
            dimension_semantics=("arbitrary",),
            vmem_limit_bytes=32 * 1024 * 1024,
        ),
        cost_estimate=pl.CostEstimate(flops=flops,
                                      transcendentals=transcendentals,
                                      bytes_accessed=bytes_accessed),
    )(gates_x, whh_t)

    hs = hs_flat.reshape(B, T, H)                    # (B, T, H)
    # Final FC as one matmul over all timesteps, emitted directly as (B, T, C).
    return (jnp.einsum('bth,ch->btc', hs, w_fc.astype(jnp.float32))
            + b_fc.astype(jnp.float32))


def reference_forward(x, w_ih, w_hh, b_ih, b_hh, w_fc, b_fc):
    """Pure-JAX reference matching torch.nn.LSTM (batch_first) + Linear."""
    B, T, D = x.shape
    H = w_hh.shape[1]

    def step(carry, x_t):
        h, c = carry
        gates = x_t @ w_ih.T + b_ih + h @ w_hh.T + b_hh
        i = jax.nn.sigmoid(gates[:, 0:H])
        f = jax.nn.sigmoid(gates[:, H:2 * H])
        g = jnp.tanh(gates[:, 2 * H:3 * H])
        o = jax.nn.sigmoid(gates[:, 3 * H:4 * H])
        c = f * c + i * g
        h = o * jnp.tanh(c)
        return (h, c), h

    h0 = jnp.zeros((B, H), jnp.float32)
    c0 = jnp.zeros((B, H), jnp.float32)
    _, hs = lax.scan(step, (h0, c0), jnp.transpose(x, (1, 0, 2)))
    out = jnp.transpose(hs, (1, 0, 2))               # (B, T, H)
    return out @ w_fc.T + b_fc


if __name__ == "__main__":
    # Module hyper-parameters (small, consistent with the forward pass).
    B, T = 2, 8            # batch, sequence length
    D = 16                 # input_dim
    H = 32                 # hidden_size
    C = 10                 # num_classes

    key = jax.random.PRNGKey(0)
    ks = jax.random.split(key, 8)
    scale = 1.0 / jnp.sqrt(jnp.float32(H))   # PyTorch-style U(-1/sqrt(H), 1/sqrt(H))

    x = jax.random.normal(ks[0], (B, T, D), jnp.float32)
    w_ih = jax.random.uniform(ks[1], (4 * H, D), jnp.float32, -scale, scale)
    w_hh = jax.random.uniform(ks[2], (4 * H, H), jnp.float32, -scale, scale)
    b_ih = jax.random.uniform(ks[3], (4 * H,), jnp.float32, -scale, scale)
    b_hh = jax.random.uniform(ks[4], (4 * H,), jnp.float32, -scale, scale)
    w_fc = jax.random.uniform(ks[5], (C, H), jnp.float32, -scale, scale)
    b_fc = jax.random.uniform(ks[6], (C,), jnp.float32, -scale, scale)

    out = lstm_classifier_forward(x, w_ih, w_hh, b_ih, b_hh, w_fc, b_fc, t_blk=4)
    out = jax.block_until_ready(out)

    ref = reference_forward(x, w_ih, w_hh, b_ih, b_hh, w_fc, b_fc)
    assert out.shape == (B, T, C)
    assert jnp.allclose(out, ref, rtol=1e-4, atol=1e-4), "mismatch vs reference"

    print("KERNEL_OK")
</pallas_src>

<mosaic_0001>
module attributes {stable_mosaic.version = 11 : i64} {
  func.func @_lstm_block_kernel(%arg0: i32, %arg1: memref<4x2x128xf32, #tpu.memory_space<vmem>>, %arg2: memref<32x128xf32, #tpu.memory_space<vmem>>, %arg3: memref<2x128xf32, #tpu.memory_space<vmem>>, %arg4: memref<2x32xf32, #tpu.memory_space<vmem>>, %arg5: memref<2x32xf32, #tpu.memory_space<vmem>>) attributes {dimension_semantics = [#tpu.dimension_semantics<arbitrary>], iteration_bounds = array<i64: 2>, scalar_prefetch = 0 : i64, scratch_operands = 2 : i64, tpu.core_type = #tpu.core_type<tc>, window_params = [{transform_indices = @transform_0, window_bounds = array<i64: 4, 2, 128>}, {pipeline_mode = #tpu.pipeline_mode<synchronous>, transform_indices = @transform_1, window_bounds = array<i64: 32, 128>}, {transform_indices = @transform_2, window_bounds = array<i64: 2, 128>}]} {
    %c0_i32 = arith.constant 0 : i32
    %0 = arith.cmpi eq, %arg0, %c0_i32 : i32
    %1 = arith.extui %0 : i1 to i32
    %c0_i32_0 = arith.constant 0 : i32
    %2 = arith.cmpi ne, %1, %c0_i32_0 : i32
    scf.if %2 {
      %cst_45 = arith.constant 0.000000e+00 : f32
      %103 = vector.broadcast %cst_45 : f32 to vector<2x32xf32>
      %c0_46 = arith.constant 0 : index
      %c0_47 = arith.constant 0 : index
      %104 = vector.load %arg4[%c0_46, %c0_47] : memref<2x32xf32, #tpu.memory_space<vmem>>, vector<2x32xf32>
      tpu.vector_store %arg4[%c0_46, %c0_47], %103 {strides = array<i32>} : memref<2x32xf32, #tpu.memory_space<vmem>>, vector<2x32xf32>,
      %cst_48 = arith.constant 0.000000e+00 : f32
      %105 = vector.broadcast %cst_48 : f32 to vector<2x32xf32>
      %c0_49 = arith.constant 0 : index
      %c0_50 = arith.constant 0 : index
      %106 = vector.load %arg5[%c0_49, %c0_50] : memref<2x32xf32, #tpu.memory_space<vmem>>, vector<2x32xf32>
      tpu.vector_store %arg5[%c0_49, %c0_50], %105 {strides = array<i32>} : memref<2x32xf32, #tpu.memory_space<vmem>>, vector<2x32xf32>,
    } else {
    }
    %c0 = arith.constant 0 : index
    %c0_1 = arith.constant 0 : index
    %3 = vector.load %arg4[%c0, %c0_1] : memref<2x32xf32, #tpu.memory_space<vmem>>, vector<2x32xf32>
    %c0_2 = arith.constant 0 : index
    %c0_3 = arith.constant 0 : index
    %4 = vector.load %arg5[%c0_2, %c0_3] : memref<2x32xf32, #tpu.memory_space<vmem>>, vector<2x32xf32>
    %c0_4 = arith.constant 0 : index
    %c0_5 = arith.constant 0 : index
    %c0_6 = arith.constant 0 : index
    %5 = vector.load %arg1[%c0_4, %c0_5, %c0_6] : memref<4x2x128xf32, #tpu.memory_space<vmem>>, vector<1x2x128xf32>
    %6 = vector.shape_cast %5 : vector<1x2x128xf32> to vector<2x128xf32>
    %c0_7 = arith.constant 0 : index
    %c0_8 = arith.constant 0 : index
    %7 = vector.load %arg2[%c0_7, %c0_8] : memref<32x128xf32, #tpu.memory_space<vmem>>, vector<32x128xf32>
    %cst = arith.constant dense<0.000000e+00> : vector<2x128xf32>
    %8 = tpu.matmul %3, %7, %cst {dimension_numbers = #tpu.dot_dimension_numbers<[1], [0], [0], [1], [0, 0, 1, 1], [], []>} : vector<2x32xf32>, vector<32x128xf32>, vector<2x128xf32> -> vector<2x128xf32>
    %9 = arith.addf %6, %8 : vector<2x128xf32>
    %10 = vector.extract_strided_slice %9 {offsets = [0, 0], sizes = [2, 96], strides = [1, 1]} : vector<2x128xf32> to vector<2x96xf32>
    %cst_9 = arith.constant 5.000000e-01 : f32
    %11 = vector.broadcast %cst_9 : f32 to vector<2x96xf32>
    %12 = arith.mulf %11, %10 : vector<2x96xf32>
    %13 = math.tanh %12 : vector<2x96xf32>
    %cst_10 = arith.constant 5.000000e-01 : f32
    %14 = vector.broadcast %cst_10 : f32 to vector<2x96xf32>
    %15 = arith.mulf %14, %13 : vector<2x96xf32>
    %cst_11 = arith.constant 5.000000e-01 : f32
    %16 = vector.broadcast %cst_11 : f32 to vector<2x96xf32>
    %17 = arith.addf %15, %16 : vector<2x96xf32>
    %18 = vector.extract_strided_slice %17 {offsets = [0, 0], sizes = [2, 32], strides = [1, 1]} : vector<2x96xf32> to vector<2x32xf32>
    %19 = vector.extract_strided_slice %17 {offsets = [0, 32], sizes = [2, 32], strides = [1, 1]} : vector<2x96xf32> to vector<2x32xf32>
    %20 = vector.extract_strided_slice %17 {offsets = [0, 64], sizes = [2, 32], strides = [1, 1]} : vector<2x96xf32> to vector<2x32xf32>
    %21 = vector.extract_strided_slice %9 {offsets = [0, 96], sizes = [2, 32], strides = [1, 1]} : vector<2x128xf32> to vector<2x32xf32>
    %22 = math.tanh %21 : vector<2x32xf32>
    %23 = arith.mulf %19, %4 : vector<2x32xf32>
    %24 = arith.mulf %18, %22 : vector<2x32xf32>
    %25 = arith.addf %23, %24 : vector<2x32xf32>
    %26 = math.tanh %25 : vector<2x32xf32>
    %27 = arith.mulf %20, %26 : vector<2x32xf32>
    %c0_12 = arith.constant 0 : index
    %c0_13 = arith.constant 0 : index
    %28 = vector.load %arg3[%c0_12, %c0_13] : memref<2x128xf32, #tpu.memory_space<vmem>>, vector<2x32xf32>
    tpu.vector_store %arg3[%c0_12, %c0_13], %27 {strides = array<i32>} : memref<2x128xf32, #tpu.memory_space<vmem>>, vector<2x32xf32>,
    %c1 = arith.constant 1 : index
    %c0_14 = arith.constant 0 : index
    %c0_15 = arith.constant 0 : index
    %29 = vector.load %arg1[%c1, %c0_14, %c0_15] : memref<4x2x128xf32, #tpu.memory_space<vmem>>, vector<1x2x128xf32>
    %30 = vector.shape_cast %29 : vector<1x2x128xf32> to vector<2x128xf32>
    %c0_16 = arith.constant 0 : index
    %c0_17 = arith.constant 0 : index
    %31 = vector.load %arg2[%c0_16, %c0_17] : memref<32x128xf32, #tpu.memory_space<vmem>>, vector<32x128xf32>
    %cst_18 = arith.constant dense<0.000000e+00> : vector<2x128xf32>
    %32 = tpu.matmul %27, %31, %cst_18 {dimension_numbers = #tpu.dot_dimension_numbers<[1], [0], [0], [1], [0, 0, 1, 1], [], []>} : vector<2x32xf32>, vector<32x128xf32>, vector<2x128xf32> -> vector<2x128xf32>
    %33 = arith.addf %30, %32 : vector<2x128xf32>
    %34 = vector.extract_strided_slice %33 {offsets = [0, 0], sizes = [2, 96], strides = [1, 1]} : vector<2x128xf32> to vector<2x96xf32>
    %cst_19 = arith.constant 5.000000e-01 : f32
    %35 = vector.broadcast %cst_19 : f32 to vector<2x96xf32>
    %36 = arith.mulf %35, %34 : vector<2x96xf32>
    %37 = math.tanh %36 : vector<2x96xf32>
    %cst_20 = arith.constant 5.000000e-01 : f32
    %38 = vector.broadcast %cst_20 : f32 to vector<2x96xf32>
    %39 = arith.mulf %38, %37 : vector<2x96xf32>
    %cst_21 = arith.constant 5.000000e-01 : f32
    %40 = vector.broadcast %cst_21 : f32 to vector<2x96xf32>
    %41 = arith.addf %39, %40 : vector<2x96xf32>
    %42 = vector.extract_strided_slice %41 {offsets = [0, 0], sizes = [2, 32], strides = [1, 1]} : vector<2x96xf32> to vector<2x32xf32>
    %43 = vector.extract_strided_slice %41 {offsets = [0, 32], sizes = [2, 32], strides = [1, 1]} : vector<2x96xf32> to vector<2x32xf32>
    %44 = vector.extract_strided_slice %41 {offsets = [0, 64], sizes = [2, 32], strides = [1, 1]} : vector<2x96xf32> to vector<2x32xf32>
    %45 = vector.extract_strided_slice %33 {offsets = [0, 96], sizes = [2, 32], strides = [1, 1]} : vector<2x128xf32> to vector<2x32xf32>
    %46 = math.tanh %45 : vector<2x32xf32>
    %47 = arith.mulf %43, %25 : vector<2x32xf32>
    %48 = arith.mulf %42, %46 : vector<2x32xf32>
    %49 = arith.addf %47, %48 : vector<2x32xf32>
    %50 = math.tanh %49 : vector<2x32xf32>
    %51 = arith.mulf %44, %50 : vector<2x32xf32>
    %c0_22 = arith.constant 0 : index
    %c32 = arith.constant 32 : index
    %52 = vector.load %arg3[%c0_22, %c32] : memref<2x128xf32, #tpu.memory_space<vmem>>, vector<2x32xf32>
    tpu.vector_store %arg3[%c0_22, %c32], %51 {strides = array<i32>} : memref<2x128xf32, #tpu.memory_space<vmem>>, vector<2x32xf32>,
    %c2 = arith.constant 2 : index
    %c0_23 = arith.constant 0 : index
    %c0_24 = arith.constant 0 : index
    %53 = vector.load %arg1[%c2, %c0_23, %c0_24] : memref<4x2x128xf32, #tpu.memory_space<vmem>>, vector<1x2x128xf32>
    %54 = vector.shape_cast %53 : vector<1x2x128xf32> to vector<2x128xf32>
    %c0_25 = arith.constant 0 : index
    %c0_26 = arith.constant 0 : index
    %55 = vector.load %arg2[%c0_25, %c0_26] : memref<32x128xf32, #tpu.memory_space<vmem>>, vector<32x128xf32>
    %cst_27 = arith.constant dense<0.000000e+00> : vector<2x128xf32>
    %56 = tpu.matmul %51, %55, %cst_27 {dimension_numbers = #tpu.dot_dimension_numbers<[1], [0], [0], [1], [0, 0, 1, 1], [], []>} : vector<2x32xf32>, vector<32x128xf32>, vector<2x128xf32> -> vector<2x128xf32>
    %57 = arith.addf %54, %56 : vector<2x128xf32>
    %58 = vector.extract_strided_slice %57 {offsets = [0, 0], sizes = [2, 96], strides = [1, 1]} : vector<2x128xf32> to vector<2x96xf32>
    %cst_28 = arith.constant 5.000000e-01 : f32
    %59 = vector.broadcast %cst_28 : f32 to vector<2x96xf32>
    %60 = arith.mulf %59, %58 : vector<2x96xf32>
    %61 = math.tanh %60 : vector<2x96xf32>
    %cst_29 = arith.constant 5.000000e-01 : f32
    %62 = vector.broadcast %cst_29 : f32 to vector<2x96xf32>
    %63 = arith.mulf %62, %61 : vector<2x96xf32>
    %cst_30 = arith.constant 5.000000e-01 : f32
    %64 = vector.broadcast %cst_30 : f32 to vector<2x96xf32>
    %65 = arith.addf %63, %64 : vector<2x96xf32>
    %66 = vector.extract_strided_slice %65 {offsets = [0, 0], sizes = [2, 32], strides = [1, 1]} : vector<2x96xf32> to vector<2x32xf32>
    %67 = vector.extract_strided_slice %65 {offsets = [0, 32], sizes = [2, 32], strides = [1, 1]} : vector<2x96xf32> to vector<2x32xf32>
    %68 = vector.extract_strided_slice %65 {offsets = [0, 64], sizes = [2, 32], strides = [1, 1]} : vector<2x96xf32> to vector<2x32xf32>
    %69 = vector.extract_strided_slice %57 {offsets = [0, 96], sizes = [2, 32], strides = [1, 1]} : vector<2x128xf32> to vector<2x32xf32>
    %70 = math.tanh %69 : vector<2x32xf32>
    %71 = arith.mulf %67, %49 : vector<2x32xf32>
    %72 = arith.mulf %66, %70 : vector<2x32xf32>
    %73 = arith.addf %71, %72 : vector<2x32xf32>
    %74 = math.tanh %73 : vector<2x32xf32>
    %75 = arith.mulf %68, %74 : vector<2x32xf32>
    %c0_31 = arith.constant 0 : index
    %c64 = arith.constant 64 : index
    %76 = vector.load %arg3[%c0_31, %c64] : memref<2x128xf32, #tpu.memory_space<vmem>>, vector<2x32xf32>
    tpu.vector_store %arg3[%c0_31, %c64], %75 {strides = array<i32>} : memref<2x128xf32, #tpu.memory_space<vmem>>, vector<2x32xf32>,
    %c3 = arith.constant 3 : index
    %c0_32 = arith.constant 0 : index
    %c0_33 = arith.constant 0 : index
    %77 = vector.load %arg1[%c3, %c0_32, %c0_33] : memref<4x2x128xf32, #tpu.memory_space<vmem>>, vector<1x2x128xf32>
    %78 = vector.shape_cast %77 : vector<1x2x128xf32> to vector<2x128xf32>
    %c0_34 = arith.constant 0 : index
    %c0_35 = arith.constant 0 : index
    %79 = vector.load %arg2[%c0_34, %c0_35] : memref<32x128xf32, #tpu.memory_space<vmem>>, vector<32x128xf32>
    %cst_36 = arith.constant dense<0.000000e+00> : vector<2x128xf32>
    %80 = tpu.matmul %75, %79, %cst_36 {dimension_numbers = #tpu.dot_dimension_numbers<[1], [0], [0], [1], [0, 0, 1, 1], [], []>} : vector<2x32xf32>, vector<32x128xf32>, vector<2x128xf32> -> vector<2x128xf32>
    %81 = arith.addf %78, %80 : vector<2x128xf32>
    %82 = vector.extract_strided_slice %81 {offsets = [0, 0], sizes = [2, 96], strides = [1, 1]} : vector<2x128xf32> to vector<2x96xf32>
    %cst_37 = arith.constant 5.000000e-01 : f32
    %83 = vector.broadcast %cst_37 : f32 to vector<2x96xf32>
    %84 = arith.mulf %83, %82 : vector<2x96xf32>
    %85 = math.tanh %84 : vector<2x96xf32>
    %cst_38 = arith.constant 5.000000e-01 : f32
    %86 = vector.broadcast %cst_38 : f32 to vector<2x96xf32>
    %87 = arith.mulf %86, %85 : vector<2x96xf32>
    %cst_39 = arith.constant 5.000000e-01 : f32
    %88 = vector.broadcast %cst_39 : f32 to vector<2x96xf32>
    %89 = arith.addf %87, %88 : vector<2x96xf32>
    %90 = vector.extract_strided_slice %89 {offsets = [0, 0], sizes = [2, 32], strides = [1, 1]} : vector<2x96xf32> to vector<2x32xf32>
    %91 = vector.extract_strided_slice %89 {offsets = [0, 32], sizes = [2, 32], strides = [1, 1]} : vector<2x96xf32> to vector<2x32xf32>
    %92 = vector.extract_strided_slice %89 {offsets = [0, 64], sizes = [2, 32], strides = [1, 1]} : vector<2x96xf32> to vector<2x32xf32>
    %93 = vector.extract_strided_slice %81 {offsets = [0, 96], sizes = [2, 32], strides = [1, 1]} : vector<2x128xf32> to vector<2x32xf32>
    %94 = math.tanh %93 : vector<2x32xf32>
    %95 = arith.mulf %91, %73 : vector<2x32xf32>
    %96 = arith.mulf %90, %94 : vector<2x32xf32>
    %97 = arith.addf %95, %96 : vector<2x32xf32>
    %98 = math.tanh %97 : vector<2x32xf32>
    %99 = arith.mulf %92, %98 : vector<2x32xf32>
    %c0_40 = arith.constant 0 : index
    %c96 = arith.constant 96 : index
    %100 = vector.load %arg3[%c0_40, %c96] : memref<2x128xf32, #tpu.memory_space<vmem>>, vector<2x32xf32>
    tpu.vector_store %arg3[%c0_40, %c96], %99 {strides = array<i32>} : memref<2x128xf32, #tpu.memory_space<vmem>>, vector<2x32xf32>,
    %c0_41 = arith.constant 0 : index
    %c0_42 = arith.constant 0 : index
    %101 = vector.load %arg4[%c0_41, %c0_42] : memref<2x32xf32, #tpu.memory_space<vmem>>, vector<2x32xf32>
    tpu.vector_store %arg4[%c0_41, %c0_42], %99 {strides = array<i32>} : memref<2x32xf32, #tpu.memory_space<vmem>>, vector<2x32xf32>,
    %c0_43 = arith.constant 0 : index
    %c0_44 = arith.constant 0 : index
    %102 = vector.load %arg5[%c0_43, %c0_44] : memref<2x32xf32, #tpu.memory_space<vmem>>, vector<2x32xf32>
    tpu.vector_store %arg5[%c0_43, %c0_44], %97 {strides = array<i32>} : memref<2x32xf32, #tpu.memory_space<vmem>>, vector<2x32xf32>,
    return
  }
  func.func @transform_0(%arg0: i32) -> (i32, i32, i32) {
    %c0_i32 = arith.constant 0 : i32
    %c0_i32_0 = arith.constant 0 : i32
    %c0_i32_1 = arith.constant 0 : i32
    return %arg0, %c0_i32, %c0_i32_0 : i32, i32, i32
  }
  func.func @transform_1(%arg0: i32) -> (i32, i32) {
    %c0_i32 = arith.constant 0 : i32
    %c0_i32_0 = arith.constant 0 : i32
    %c0_i32_1 = arith.constant 0 : i32
    return %c0_i32, %c0_i32_0 : i32, i32
  }
  func.func @transform_2(%arg0: i32) -> (i32, i32) {
    %c0_i32 = arith.constant 0 : i32
    %c0_i32_0 = arith.constant 0 : i32
    return %c0_i32, %arg0 : i32, i32
  }
}

</mosaic_0001>

<llo_original>
// kernel: lstm_classifier_forward.1
$region0: #{lstm_classifier_forward.1}
  #allocation0 [shape = 'u32[]', space=smem, size = 0x4, offset = 0x4, fixed_abs, tag = 'smem constant byte address 0x4 - core index']
  #allocation1 [shape = 'u32[72,128]{1,0:T(1,128)}', space=vmem, size = 0x9000, scoped, tag = 'internal scratch']
  #allocation2 [shape = 'f32[2,32]{1,0:T(2,128)}', space=vmem, size = 0x400, scoped, tag = 'scratch operand']
  #allocation3 [shape = 'f32[2,32]{1,0:T(2,128)}', space=vmem, size = 0x400, scoped, tag = 'scratch operand']
  %s0 = inlined_call_operand.vmem [shape: f32[8,2,128], index: 0, kind: input, shape index: {}]
  %s1 = inlined_call_operand.vmem [shape: f32[32,128], index: 1, kind: input, shape index: {}]
  %s2 = inlined_call_operand.vmem [shape: f32[2,256], index: 2, kind: output, shape index: {}]
  %s3 = sld [smem:[#allocation0]]
  $region45: #{lstm_classifier_forward.1} parent=0
    _
  %s5 = ssub.s32 1, %s3
  %s6 = scalar_select 0, %s5, %s3
  loop: start=0, step=1, limit=4
  $region2: #{lstm_classifier_forward.1} parent=0 // loop_pre_header
    _
  $region3: #{lstm_classifier_forward.1} parent=0 // loop_header
    %s8 = sphi 0, %s12
    %p9 = scmp.ge.s32.totalorder %s8, 4
    %s18 = sphi 0, %s20
    %s21 = sphi 0, %s18
    %s22 = sphi 0, %s21
    %s38 = sphi 0, %s22
    %s42 = sphi 0, %s42
    %s44 = sphi 0, %s42
    %s45 = sphi 0, %s44
    %s59 = sphi 0, %s45
    %s65 = sphi 0, %s67
    %s68 = sphi 0, %s65
    %s69 = sphi 0, %s68
    %s85 = sphi 0, %s69
  $region4: #{lstm_classifier_forward.1} parent=0 // loop_header_branch
    %11 = sbr.rel (%p9) target = $region8
  $region5: #{lstm_classifier_forward.1} parent=0 // loop_body
    %s13 = ssub.s32 %s8, 1
    %s14 = ssub.s32 %s8, 2
    %s15 = sadd.s32 %s8, 1
    %s16 = ssub.s32 %s8, %s15
    %p17 = scmp.eq.s32.totalorder %s16, 0
    %s19 = sadd.s32 %s18, 1
    %s20 = scalar_select %p17, %s18, %s19
    %p23 = pneg %p17
    %p24 = scmp.eq.s32.totalorder %s8, 1
    %p25 = por %p23, %p24
    %p26 = scmp.ne.s32.totalorder %s18, %s21
    %p27 = scmp.eq.s32.totalorder %s8, 0
    %p28 = por %p26, %p27
    %p29 = scmp.ne.s32.totalorder %s18, %s21
    %p30 = scmp.eq.s32.totalorder %s13, 1
    %p31 = por %p29, %p30
    %p32 = scmp.ne.s32.totalorder %s21, %s22
    %p33 = scmp.eq.s32.totalorder %s13, 0
    %p34 = por %p32, %p33
    %p35 = scmp.ne.s32.totalorder %s21, %s22
    %p36 = scmp.eq.s32.totalorder %s14, 1
    %p37 = por %p35, %p36
    %p39 = scmp.ne.s32.totalorder %s22, %s38
    %p40 = scmp.eq.s32.totalorder %s14, 0
    %p41 = por %p39, %p40
    %s43 = sadd.s32 %s42, 1
    %p46 = scmp.eq.s32.totalorder %s8, 1
    %p47 = scmp.ne.s32.totalorder %s42, %s44
    %p48 = scmp.eq.s32.totalorder %s8, 0
    %p49 = por %p47, %p48
    %p50 = scmp.ne.s32.totalorder %s42, %s44
    %p51 = scmp.eq.s32.totalorder %s13, 1
    %p52 = por %p50, %p51
    %p53 = scmp.ne.s32.totalorder %s44, %s45
    %p54 = scmp.eq.s32.totalorder %s13, 0
    %p55 = por %p53, %p54
    %p56 = scmp.ne.s32.totalorder %s44, %s45
    %p57 = scmp.eq.s32.totalorder %s14, 1
    %p58 = por %p56, %p57
    %p60 = scmp.ne.s32.totalorder %s45, %s59
    %p61 = scmp.eq.s32.totalorder %s14, 0
    %p62 = por %p60, %p61
    %s63 = ssub.s32 %s8, %s15
    %p64 = scmp.eq.s32.totalorder %s63, 0
    %s66 = sadd.s32 %s65, 1
    %s67 = scalar_select %p64, %s65, %s66
    %p70 = pneg %p64
    %p71 = scmp.eq.s32.totalorder %s8, 1
    %p72 = por %p70, %p71
    %p73 = scmp.ne.s32.totalorder %s65, %s68
    %p74 = scmp.eq.s32.totalorder %s8, 0
    %p75 = por %p73, %p74
    %p76 = scmp.ne.s32.totalorder %s65, %s68
    %p77 = scmp.eq.s32.totalorder %s13, 1
    %p78 = por %p76, %p77
    %p79 = scmp.ne.s32.totalorder %s68, %s69
    %p80 = scmp.eq.s32.totalorder %s13, 0
    %p81 = por %p79, %p80
    %p82 = scmp.ne.s32.totalorder %s68, %s69
    %p83 = scmp.eq.s32.totalorder %s14, 1
    %p84 = por %p82, %p83
    %p86 = scmp.ne.s32.totalorder %s69, %s85
    %p87 = scmp.eq.s32.totalorder %s14, 0
    %p88 = por %p86, %p87
    %p89 = scmp.le.s32.totalorder 1, %s8
    %p90 = scmp.lt.s32.totalorder %s8, 3
    %p91 = pnand %p89, %p90
    %p92 = pneg %p91
    // Predicated region
    $region9: #{lstm_classifier_forward.1} parent=5 // pred_check
      _
    $region10: #{lstm_classifier_forward.1} parent=5 // pred_check_branch
      %94 = sbr.rel (%p91) target = $region12
    $region11: #{lstm_classifier_forward.1} parent=5 // pred_region
      %s95 = ssub.s32 %s8, 1
      // Predicated region
      $region13: #{lstm_classifier_forward.1} parent=11 // pred_check
        %p96 = pneg %p55
      $region14: #{lstm_classifier_forward.1} parent=11 // pred_check_branch
        %98 = sbr.rel (%p96) target = $region16
      $region15: #{lstm_classifier_forward.1} parent=11 // pred_region
        _
      $region16: #{lstm_classifier_forward.1} parent=11 // pred_fallthru
        _
    $region12: #{lstm_classifier_forward.1} parent=5 // pred_fallthru
      _
    %p99 = scmp.lt.s32.totalorder %s8, 2
    // Predicated region
    $region17: #{lstm_classifier_forward.1} parent=5 // pred_check
      %p100 = pneg %p99
    $region18: #{lstm_classifier_forward.1} parent=5 // pred_check_branch
      %102 = sbr.rel (%p100) target = $region20
    $region19: #{lstm_classifier_forward.1} parent=5 // pred_region
      // Predicated region
      $region21: #{lstm_classifier_forward.1} parent=19 // pred_check
        %p103 = pneg %p28
      $region22: #{lstm_classifier_forward.1} parent=19 // pred_check_branch
        %105 = sbr.rel (%p103) target = $region24
      $region23: #{lstm_classifier_forward.1} parent=19 // pred_region
        %s106 = smul.u32 4, %s8
        %p107 = scmp.lt.s32.totalorder %s106, 7
        %s108 = scalar_select %p107, %s106, 7
        %s109 = smul.addr %s108, 2
        %s110 = scalar_lea.vmem %s0, %s109
        %s111 = smul.u32 4, %s8
      $region24: #{lstm_classifier_forward.1} parent=19 // pred_fallthru
        _
    $region20: #{lstm_classifier_forward.1} parent=5 // pred_fallthru
      _
    %p112 = scmp.le.s32.totalorder 1, %s8
    %p113 = scmp.lt.s32.totalorder %s8, 3
    %p114 = pnand %p112, %p113
    %p115 = pneg %p114
    // Predicated region
    $region25: #{lstm_classifier_forward.1} parent=5 // pred_check
      _
    $region26: #{lstm_classifier_forward.1} parent=5 // pred_check_branch
      %117 = sbr.rel (%p114) target = $region28
    $region27: #{lstm_classifier_forward.1} parent=5 // pred_region
      %s118 = ssub.s32 %s8, 1
      %s119 = smul.u32 4, %s13
      %p120 = scmp.lt.s32.totalorder %s119, 7
      %s121 = scalar_select %p120, %s119, 7
      %s122 = smul.addr %s121, 2
      %s123 = scalar_lea.vmem %s0, %s122
      %p124 = pneg %p34
      %p125 = pneg %p31
      %p126 = pneg %p55
      %p127 = pneg %p52
      %p128 = pneg %p81
      %p129 = pneg %p78
      %p130 = scmp.lt.s32.totalorder %s13, 1
      %s131 = scalar_select %p130, %s13, 1
      %s132 = smul.addr %s131, 2
      %s133 = scalar_lea.vmem %s2, %s132
      %s134 = smul.u32 4, %s13
      %p135 = scmp.lt.s32.totalorder %s134, 7
      %s136 = scalar_select %p135, %s134, 7
      %s137 = smul.addr %s136, 2
      %s138 = scalar_lea.vmem %s0, %s137
      %s139 = smul.u32 4, %s13
      %p140 = scmp.lt.s32.totalorder %s13, 1
      %s141 = scalar_select %p140, %s13, 1
      %s142 = smul.addr %s141, 2
      %s143 = scalar_lea.vmem %s2, %s142
      %p144 = scmp.eq.s32.totalorder %s13, 0
      // Predicated region
      $region29: #{lstm_classifier_forward.1} parent=27 // pred_check
        %p145 = pneg %p144
      $region30: #{lstm_classifier_forward.1} parent=27 // pred_check_branch
        %147 = sbr.rel (%p145) target = $region32
      $region31: #{lstm_classifier_forward.1} parent=27 // pred_region
        %vm148 = vcmask 254976
        %149 = vst.msk [vmem:[#allocation2] sm:$0x3] %vm148, 0.0
        %150 = vst.msk [vmem:[#allocation3] sm:$0x3] %vm148, 0.0
      $region32: #{lstm_classifier_forward.1} parent=27 // pred_fallthru
        _
      %v151 = vld [vmem:[#allocation2] sm:$0x3]
      %v152 = vld [vmem:[#allocation3] sm:$0x3]
      %v153 = vld [vmem:[%s138] sm:$0x3]
      %v154 = vld [vmem:[%s1] sm:$0xff]
      %v155 = vld [vmem:[%s1 + $0x8] sm:$0xff]
      %v156 = vld [vmem:[%s1 + $0x10] sm:$0xff]
      %v157 = vld [vmem:[%s1 + $0x18] sm:$0xff]
      %vm158 = vcmask 261120
      %v160 = vsel %vm158, %v151, 0
      %162 = vmatpush.msra.mxu0 0.0
      %163 = vmatpush.msra.mxu0 0.0
      %164 = vmatpush.msra.mxu0 0.0
      %165 = vmatpush.msra.mxu0 0.0
      %166 = vmatpush.msra.mxu0 0.0
      %167 = vmatpush.msra.mxu0 0.0
      %168 = vmatpush.msra.mxu0 0.0
      %169 = vmatpush.msra.mxu0 0.0
      %170 = vmatpush.msra.mxu0 0.0
      %171 = vmatpush.msra.mxu0 0.0
      %172 = vmatpush.msra.mxu0 0.0
      %173 = vmatpush.msra.mxu0 0.0
      %174 = vmatpush.msra.mxu0 %v157
      %175 = vmatpush.msra.mxu0 %v156
      %176 = vmatpush.msra.mxu0 %v155
      %177 = vmatpush.msra.mxu0 %v154
      %178 = vmatmul.f32.gmra.mxu0 %v160
      %v179 = vpop.f32.mrf.mxu0
      %v180 = vadd.f32 0.0, %v179
      %181 = vdwg.mxu0
      %v182 = vadd.f32 %v153, %v180
      %v183 = vmul.f32 %v182, 0.5
      %v184 = vtanh.pop %v183
      %v185 = vmul.f32 %v184, 0.5
      %v186 = vadd.f32 %v185, 0.5
      %v187 = vtanh.pop %v182
      %189 = vrot.lane.b32.xlu0 %v152, 32
      %v190 = vpop.permute.xlu0 %189
      %v192 = vmul.f32 %v186, %v190
      %194 = vrot.lane.b32.xlu0 %v187, 32
      %v195 = vpop.permute.xlu0 %194
      %v197 = vmul.f32 %v186, %v195
      %199 = vrot.lane.b32.xlu0 %v197, 32
      %v200 = vpop.permute.xlu0 %199
      %v202 = vadd.f32 %v192, %v200
      %v203 = vtanh.pop %v202
      %205 = vrot.lane.b32.xlu0 %v203, 32
      %v206 = vpop.permute.xlu0 %205
      %v208 = vmul.f32 %v186, %v206
      %210 = vrot.lane.b32.xlu0 %v208, 64
      %v211 = vpop.permute.xlu0 %210
      %vm213 = vcmask 254976
      %214 = vst.msk [vmem:[%s143] sm:$0x3] %vm213, %v211
      %s215 = scalar_lea.vmem %s138, 2
      %v216 = vld [vmem:[%s215] sm:$0x3]
      %v217 = vld [vmem:[%s1] sm:$0xff]
      %v218 = vld [vmem:[%s1 + $0x8] sm:$0xff]
      %v219 = vld [vmem:[%s1 + $0x10] sm:$0xff]
      %v220 = vld [vmem:[%s1 + $0x18] sm:$0xff]
      %v221 = vsel %vm158, %v211, 0
      %223 = vmatpush.msra.mxu0 0.0
      %224 = vmatpush.msra.mxu0 0.0
      %225 = vmatpush.msra.mxu0 0.0
      %226 = vmatpush.msra.mxu0 0.0
      %227 = vmatpush.msra.mxu0 0.0
      %228 = vmatpush.msra.mxu0 0.0
      %229 = vmatpush.msra.mxu0 0.0
      %230 = vmatpush.msra.mxu0 0.0
      %231 = vmatpush.msra.mxu0 0.0
      %232 = vmatpush.msra.mxu0 0.0
      %233 = vmatpush.msra.mxu0 0.0
      %234 = vmatpush.msra.mxu0 0.0
      %235 = vmatpush.msra.mxu0 %v220
      %236 = vmatpush.msra.mxu0 %v219
      %237 = vmatpush.msra.mxu0 %v218
      %238 = vmatpush.msra.mxu0 %v217
      %239 = vmatmul.f32.gmra.mxu0 %v221
      %v240 = vpop.f32.mrf.mxu0
      %v241 = vadd.f32 0.0, %v240
      %242 = vdwg.mxu0
      %v243 = vadd.f32 %v216, %v241
      %v244 = vmul.f32 %v243, 0.5
      %v245 = vtanh.pop %v244
      %v246 = vmul.f32 %v245, 0.5
      %v247 = vadd.f32 %v246, 0.5
      %v248 = vtanh.pop %v243
      %v249 = vmul.f32 %v247, %v202
      %251 = vrot.lane.b32.xlu0 %v248, 32
      %v252 = vpop.permute.xlu0 %251
      %v254 = vmul.f32 %v247, %v252
      %256 = vrot.lane.b32.xlu0 %v254, 32
      %v257 = vpop.permute.xlu0 %256
      %v259 = vadd.f32 %v249, %v257
      %v260 = vtanh.pop %v259
      %262 = vrot.lane.b32.xlu0 %v260, 32
      %v263 = vpop.permute.xlu0 %262
      %v265 = vmul.f32 %v247, %v263
      %267 = vrot.lane.b32.xlu0 %v265, 96
      %v268 = vpop.permute.xlu0 %267
      %vm270 = vcmask 517376
      %271 = vst.msk [vmem:[%s143] sm:$0x3] %vm270, %v268
      %s272 = scalar_lea.vmem %s138, 4
      %v273 = vld [vmem:[%s272] sm:$0x3]
      %v274 = vld [vmem:[%s1] sm:$0xff]
      %v275 = vld [vmem:[%s1 + $0x8] sm:$0xff]
      %v276 = vld [vmem:[%s1 + $0x10] sm:$0xff]
      %v277 = vld [vmem:[%s1 + $0x18] sm:$0xff]
      %278 = vrot.lane.b32.xlu0 %v265, 64
      %v279 = vpop.permute.xlu0 %278
      %v280 = vsel %vm158, %v279, 0
      %282 = vmatpush.msra.mxu0 0.0
      %283 = vmatpush.msra.mxu0 0.0
      %284 = vmatpush.msra.mxu0 0.0
      %285 = vmatpush.msra.mxu0 0.0
      %286 = vmatpush.msra.mxu0 0.0
      %287 = vmatpush.msra.mxu0 0.0
      %288 = vmatpush.msra.mxu0 0.0
      %289 = vmatpush.msra.mxu0 0.0
      %290 = vmatpush.msra.mxu0 0.0
      %291 = vmatpush.msra.mxu0 0.0
      %292 = vmatpush.msra.mxu0 0.0
      %293 = vmatpush.msra.mxu0 0.0
      %294 = vmatpush.msra.mxu0 %v277
      %295 = vmatpush.msra.mxu0 %v276
      %296 = vmatpush.msra.mxu0 %v275
      %297 = vmatpush.msra.mxu0 %v274
      %298 = vmatmul.f32.gmra.mxu0 %v280
      %v299 = vpop.f32.mrf.mxu0
      %v300 = vadd.f32 0.0, %v299
      %301 = vdwg.mxu0
      %v302 = vadd.f32 %v273, %v300
      %v303 = vmul.f32 %v302, 0.5
      %v304 = vtanh.pop %v303
      %v305 = vmul.f32 %v304, 0.5
      %v306 = vadd.f32 %v305, 0.5
      %v307 = vtanh.pop %v302
      %v308 = vmul.f32 %v306, %v259
      %310 = vrot.lane.b32.xlu0 %v307, 32
      %v311 = vpop.permute.xlu0 %310
      %v313 = vmul.f32 %v306, %v311
      %315 = vrot.lane.b32.xlu0 %v313, 32
      %v316 = vpop.permute.xlu0 %315
      %v318 = vadd.f32 %v308, %v316
      %v319 = vtanh.pop %v318
      %321 = vrot.lane.b32.xlu0 %v319, 32
      %v322 = vpop.permute.xlu0 %321
      %v324 = vmul.f32 %v306, %v322
      %vm325 = vcmask 779776
      %326 = vst.msk [vmem:[%s143] sm:$0x3] %vm325, %v324
      %s327 = scalar_lea.vmem %s138, 6
      %v328 = vld [vmem:[%s327] sm:$0x3]
      %v329 = vld [vmem:[%s1] sm:$0xff]
      %v330 = vld [vmem:[%s1 + $0x8] sm:$0xff]
      %v331 = vld [vmem:[%s1 + $0x10] sm:$0xff]
      %v332 = vld [vmem:[%s1 + $0x18] sm:$0xff]
      %334 = vrot.lane.b32.xlu0 %v324, 64
      %v335 = vpop.permute.xlu0 %334
      %v336 = vsel %vm158, %v335, 0
      %338 = vmatpush.msra.mxu0 0.0
      %339 = vmatpush.msra.mxu0 0.0
      %340 = vmatpush.msra.mxu0 0.0
      %341 = vmatpush.msra.mxu0 0.0
      %342 = vmatpush.msra.mxu0 0.0
      %343 = vmatpush.msra.mxu0 0.0
      %344 = vmatpush.msra.mxu0 0.0
      %345 = vmatpush.msra.mxu0 0.0
      %346 = vmatpush.msra.mxu0 0.0
      %347 = vmatpush.msra.mxu0 0.0
      %348 = vmatpush.msra.mxu0 0.0
      %349 = vmatpush.msra.mxu0 0.0
      %350 = vmatpush.msra.mxu0 %v332
      %351 = vmatpush.msra.mxu0 %v331
      %352 = vmatpush.msra.mxu0 %v330
      %353 = vmatpush.msra.mxu0 %v329
      %354 = vmatmul.f32.gmra.mxu0 %v336
      %v355 = vpop.f32.mrf.mxu0
      %v356 = vadd.f32 0.0, %v355
      %357 = vdwg.mxu0
      %v358 = vadd.f32 %v328, %v356
      %v359 = vmul.f32 %v358, 0.5
      %v360 = vtanh.pop %v359
      %v361 = vmul.f32 %v360, 0.5
      %v362 = vadd.f32 %v361, 0.5
      %v363 = vtanh.pop %v358
      %v364 = vmul.f32 %v362, %v318
      %366 = vrot.lane.b32.xlu0 %v363, 32
      %v367 = vpop.permute.xlu0 %366
      %v369 = vmul.f32 %v362, %v367
      %371 = vrot.lane.b32.xlu0 %v369, 32
      %v372 = vpop.permute.xlu0 %371
      %v374 = vadd.f32 %v364, %v372
      %v375 = vtanh.pop %v374
      %377 = vrot.lane.b32.xlu0 %v375, 32
      %v378 = vpop.permute.xlu0 %377
      %v380 = vmul.f32 %v362, %v378
      %382 = vrot.lane.b32.xlu0 %v380, 32
      %v383 = vpop.permute.xlu0 %382
      %vm385 = vcmask 1042176
      %386 = vst.msk [vmem:[%s143] sm:$0x3] %vm385, %v383
      %387 = vrot.lane.b32.xlu0 %v380, 64
      %v388 = vpop.permute.xlu0 %387
      %390 = vst.msk [vmem:[#allocation2] sm:$0x3] %vm213, %v388
      %392 = vrot.lane.b32.xlu0 %v374, 96
      %v393 = vpop.permute.xlu0 %392
      %395 = vst.msk [vmem:[#allocation3] sm:$0x3] %vm213, %v393
      %p396 = scmp.lt.s32.totalorder %s13, 1
      %s397 = scalar_select %p396, %s13, 1
      %s398 = smul.addr %s397, 2
      %s399 = scalar_lea.vmem %s2, %s398
      // Predicated region
      $region33: #{lstm_classifier_forward.1} parent=27 // pred_check
        %p400 = pneg %p78
      $region34: #{lstm_classifier_forward.1} parent=27 // pred_check_branch
        %402 = sbr.rel (%p400) target = $region36
      $region35: #{lstm_classifier_forward.1} parent=27 // pred_region
        _
      $region36: #{lstm_classifier_forward.1} parent=27 // pred_fallthru
        _
    $region28: #{lstm_classifier_forward.1} parent=5 // pred_fallthru
      _
    %p403 = scmp.le.s32.totalorder 2, %s8
    // Predicated region
    $region37: #{lstm_classifier_forward.1} parent=5 // pred_check
      %p404 = pneg %p403
    $region38: #{lstm_classifier_forward.1} parent=5 // pred_check_branch
      %406 = sbr.rel (%p404) target = $region40
    $region39: #{lstm_classifier_forward.1} parent=5 // pred_region
      %s407 = ssub.s32 %s8, 2
      // Predicated region
      $region41: #{lstm_classifier_forward.1} parent=39 // pred_check
        %p408 = pneg %p84
      $region42: #{lstm_classifier_forward.1} parent=39 // pred_check_branch
        %410 = sbr.rel (%p408) target = $region44
      $region43: #{lstm_classifier_forward.1} parent=39 // pred_region
        %p411 = scmp.lt.s32.totalorder %s14, 1
        %s412 = scalar_select %p411, %s14, 1
        %s413 = smul.addr %s412, 2
        %s414 = scalar_lea.vmem %s2, %s413
      $region44: #{lstm_classifier_forward.1} parent=39 // pred_fallthru
        _
    $region40: #{lstm_classifier_forward.1} parent=5 // pred_fallthru
      _
  $region6: #{lstm_classifier_forward.1} parent=0 // loop_footer
    %s12 = sadd.s32 1, %s8
  $region7: #{lstm_classifier_forward.1} parent=0 // loop_footer_branch
    %7 = sbr.rel target = $region3
  $region8: #{lstm_classifier_forward.1} parent=0 // loop_exit
    _

</llo_original>
